<compile_context>
chip_gen: v6e
topology: v6e:2x2x1
jax: 0.10.0
libtpu: 0.0.40
codegen_flags: <defaults>
</compile_context>

<pallas_src>
import functools

import jax
import jax.numpy as jnp
from jax import lax
from jax.experimental import pallas as pl
from jax.experimental.pallas import tpu as pltpu


def _round_up(x, m):
    return ((x + m - 1) // m) * m


def dmvn_kernel(x_ref, wb_ref, bb_ref, wh_ref, bh_ref, out_ref, *, out_dim, mean_w):
    # Backbone: Linear(IN -> hidden_pad) + ReLU.  bf16 operands, f32 accumulate,
    # elementwise math in f32.
    h = jnp.dot(x_ref[...], wb_ref[...], preferred_element_type=jnp.float32)
    h = jnp.maximum(h + bb_ref[...], 0.0)

    # Fused heads: one MXU push producing the packed [mean | tril_flat | pad] slab.
    packed = jnp.dot(h.astype(wh_ref.dtype), wh_ref[...],
                     preferred_element_type=jnp.float32) + bh_ref[...]

    # exp() only on the diagonal positions of the flattened tril (VPU select, no MXU).
    idx = lax.broadcasted_iota(jnp.int32, packed.shape, 1)
    rel = idx - mean_w
    diag_mask = (rel >= 0) & (rel < out_dim * out_dim) & (rel % (out_dim + 1) == 0)
    out_ref[...] = jnp.where(diag_mask, jnp.exp(packed), packed)


def make_params(key, in_dim, hidden_dim, out_dim):
    cov_lower_dim = out_dim * (out_dim - 1) // 2
    ks = jax.random.split(key, 8)

    def lin(kw, kb, fan_in, fan_out):
        scale = 1.0 / jnp.sqrt(jnp.float32(fan_in))
        w = jax.random.uniform(kw, (fan_in, fan_out), jnp.float32, -scale, scale)
        b = jax.random.uniform(kb, (1, fan_out), jnp.float32, -scale, scale)
        return w, b

    wb, bb = lin(ks[0], ks[1], in_dim, hidden_dim)          # backbone Linear
    wm, bm = lin(ks[2], ks[3], hidden_dim, out_dim)         # mean_head
    wd, bd = lin(ks[4], ks[5], hidden_dim, out_dim)         # logdiag_head
    wl, bl = lin(ks[6], ks[7], hidden_dim, cov_lower_dim)   # lower_head
    return dict(wb=wb, bb=bb, wm=wm, bm=bm, wd=wd, bd=bd, wl=wl, bl=bl)


def pack_params(params, in_dim, hidden_dim, out_dim):
    """Host-side packing: pad hidden to 128, fuse mean/logdiag/lower heads into one
    weight whose columns already land at the packed output layout
    [ mean (out) | tril_flat (out*out, torch.tril_indices offset=-1 order) | pad ]."""
    mean_w = out_dim
    packed_w = mean_w + out_dim * out_dim
    hp = _round_up(hidden_dim, 128)
    wp = _round_up(packed_w, 128)

    wb = jnp.zeros((in_dim, hp), jnp.float32).at[:, :hidden_dim].set(params["wb"])
    bb = jnp.zeros((1, hp), jnp.float32).at[:, :hidden_dim].set(params["bb"])

    wh = jnp.zeros((hp, wp), jnp.float32)
    bh = jnp.zeros((1, wp), jnp.float32)

    # mean columns 0..out_dim-1
    wh = wh.at[:hidden_dim, :out_dim].set(params["wm"])
    bh = bh.at[:, :out_dim].set(params["bm"])

    # diagonal (logdiag) column k -> mean_w + k*out_dim + k
    d = jnp.arange(out_dim)
    diag_cols = mean_w + d * out_dim + d
    wh = wh.at[:hidden_dim, diag_cols].set(params["wd"])
    bh = bh.at[0, diag_cols].set(params["bd"][0])

    # strictly-lower column idx (torch.tril_indices(dim, dim, offset=-1) order)
    i_idx, j_idx = jnp.tril_indices(out_dim, k=-1)
    low_cols = mean_w + i_idx * out_dim + j_idx
    wh = wh.at[:hidden_dim, low_cols].set(params["wl"])
    bh = bh.at[0, low_cols].set(params["bl"][0])

    return dict(wb=wb.astype(jnp.bfloat16), bb=bb,
                wh=wh.astype(jnp.bfloat16), bh=bh,
                hp=hp, wp=wp, mean_w=mean_w)


def deep_multivariate_normal(x, params, hidden_dim, out_dim, *, block_b=512):
    B = x.shape[0]
    x_flat = x.reshape(B, -1).astype(jnp.float32)          # glue: flatten NCHW -> [B, IN]
    in_dim = x_flat.shape[1]

    packed = pack_params(params, in_dim, hidden_dim, out_dim)
    wb, bb, wh, bh = packed["wb"], packed["bb"], packed["wh"], packed["bh"]
    hp, wp, mean_w = packed["hp"], packed["wp"], packed["mean_w"]

    # Batch tiling: full batch as one block when small; otherwise stream TB-row blocks
    # (multiple of 8) with batch padding, weights VMEM-resident across the grid.
    if B <= block_b:
        TB, Bp = B, B
    else:
        TB = block_b
        Bp = _round_up(B, TB)

    xb = x_flat.astype(jnp.bfloat16)
    if Bp != B:
        xb = jnp.pad(xb, ((0, Bp - B), (0, 0)))

    grid = (Bp // TB,)
    kern = functools.partial(dmvn_kernel, out_dim=out_dim, mean_w=mean_w)

    flops = 2 * Bp * in_dim * hp + 2 * Bp * hp * wp
    bytes_accessed = (Bp * in_dim * 2 + in_dim * hp * 2 + hp * wp * 2
                      + (hp + wp) * 4 + Bp * wp * 4)

    out = pl.pallas_call(
        kern,
        out_shape=jax.ShapeDtypeStruct((Bp, wp), jnp.float32),
        grid_spec=pltpu.PrefetchScalarGridSpec(
            num_scalar_prefetch=0,
            grid=grid,
            in_specs=[
                pl.BlockSpec((TB, in_dim), lambda i: (i, 0)),   # x streams over batch
                pl.BlockSpec((in_dim, hp), lambda i: (0, 0)),   # resident backbone W
                pl.BlockSpec((1, hp), lambda i: (0, 0)),        # resident backbone b
                pl.BlockSpec((hp, wp), lambda i: (0, 0)),       # resident fused-head W
                pl.BlockSpec((1, wp), lambda i: (0, 0)),        # resident fused-head b
            ],
            out_specs=pl.BlockSpec((TB, wp), lambda i: (i, 0)), # lane-dense 128-wide slab
        ),
        compiler_params=pltpu.CompilerParams(
            dimension_semantics=("parallel",),
            vmem_limit_bytes=32 * 1024 * 1024,   # explicit, safe on v7x's 64 MiB VMEM
        ),
        cost_estimate=pl.CostEstimate(
            flops=flops, transcendentals=Bp * wp, bytes_accessed=bytes_accessed),
    )(xb, wb, bb, wh, bh)

    out = out[:B]
    mean = out[:, :out_dim]
    scale_tril = out[:, out_dim:out_dim + out_dim * out_dim].reshape(B, out_dim, out_dim)
    return mean, scale_tril


def reference_forward(x, params, out_dim, matmul_dtype=jnp.float32):
    """Pure-JAX reference matching the PyTorch module semantics.
    matmul_dtype=bf16 reproduces the kernel's bf16-operand / f32-accumulate recipe."""
    B = x.shape[0]
    xf = x.reshape(B, -1).astype(jnp.float32)

    def mm(a, w):
        return jnp.dot(a.astype(matmul_dtype), w.astype(matmul_dtype),
                       preferred_element_type=jnp.float32)

    h = jnp.maximum(mm(xf, params["wb"]) + params["bb"], 0.0)
    mean = mm(h, params["wm"]) + params["bm"]
    diag = jnp.exp(mm(h, params["wd"]) + params["bd"])
    lower = mm(h, params["wl"]) + params["bl"]

    d = jnp.arange(out_dim)
    L = jnp.zeros((B, out_dim, out_dim), jnp.float32)
    L = L.at[:, d, d].set(diag)
    i_idx, j_idx = jnp.tril_indices(out_dim, k=-1)
    L = L.at[:, i_idx, j_idx].set(lower)
    return mean, L


if __name__ == "__main__":
    B, C, H, W = 2, 4, 16, 16
    hidden_dim = 32
    out_dim = 8
    in_dim = C * H * W

    key = jax.random.PRNGKey(0)
    kx, kp = jax.random.split(key)
    x = jax.random.normal(kx, (B, C, H, W), jnp.float32)
    params = make_params(kp, in_dim, hidden_dim, out_dim)

    mean, scale_tril = deep_multivariate_normal(x, params, hidden_dim, out_dim)
    mean = jax.block_until_ready(mean)
    scale_tril = jax.block_until_ready(scale_tril)

    assert mean.shape == (B, out_dim)
    assert scale_tril.shape == (B, out_dim, out_dim)

    # Tight check against a reference using the same bf16-operand / f32-accumulate math.
    mean_bf, tril_bf = reference_forward(x, params, out_dim, matmul_dtype=jnp.bfloat16)
    assert jnp.allclose(mean, mean_bf, atol=1e-4, rtol=1e-4)
    assert jnp.allclose(scale_tril, tril_bf, atol=1e-4, rtol=1e-4)

    # Loose check against the full-f32 PyTorch-semantics reference (bf16 quantization).
    mean_f32, tril_f32 = reference_forward(x, params, out_dim, matmul_dtype=jnp.float32)
    assert jnp.allclose(mean, mean_f32, atol=5e-2, rtol=5e-2)
    assert jnp.allclose(scale_tril, tril_f32, atol=5e-2, rtol=5e-2)

    print("KERNEL_OK")
</pallas_src>

<mosaic_0001>
module attributes {stable_mosaic.version = 11 : i64} {
  func.func @dmvn_kernel(%arg0: i32, %arg1: memref<2x1024xbf16, #tpu.memory_space<vmem>>, %arg2: memref<1024x128xbf16, #tpu.memory_space<vmem>>, %arg3: memref<1x128xf32, #tpu.memory_space<vmem>>, %arg4: memref<128x128xbf16, #tpu.memory_space<vmem>>, %arg5: memref<1x128xf32, #tpu.memory_space<vmem>>, %arg6: memref<2x128xf32, #tpu.memory_space<vmem>>) attributes {dimension_semantics = [#tpu.dimension_semantics<parallel>], iteration_bounds = array<i64: 1>, scalar_prefetch = 0 : i64, scratch_operands = 0 : i64, tpu.core_type = #tpu.core_type<tc>, window_params = [{transform_indices = @transform_0, window_bounds = array<i64: 2, 1024>}, {pipeline_mode = #tpu.pipeline_mode<synchronous>, transform_indices = @transform_1, window_bounds = array<i64: 1024, 128>}, {pipeline_mode = #tpu.pipeline_mode<synchronous>, transform_indices = @transform_2, window_bounds = array<i64: 1, 128>}, {pipeline_mode = #tpu.pipeline_mode<synchronous>, transform_indices = @transform_3, window_bounds = array<i64: 128, 128>}, {pipeline_mode = #tpu.pipeline_mode<synchronous>, transform_indices = @transform_4, window_bounds = array<i64: 1, 128>}, {transform_indices = @transform_5, window_bounds = array<i64: 2, 128>}]} {
    %c0 = arith.constant 0 : index
    %c0_0 = arith.constant 0 : index
    %0 = vector.load %arg1[%c0, %c0_0] : memref<2x1024xbf16, #tpu.memory_space<vmem>>, vector<2x1024xbf16>
    %c0_1 = arith.constant 0 : index
    %c0_2 = arith.constant 0 : index
    %1 = vector.load %arg2[%c0_1, %c0_2] : memref<1024x128xbf16, #tpu.memory_space<vmem>>, vector<1024x128xbf16>
    %cst = arith.constant dense<0.000000e+00> : vector<2x128xf32>
    %2 = tpu.matmul %0, %1, %cst {dimension_numbers = #tpu.dot_dimension_numbers<[1], [0], [0], [1], [0, 0, 1, 1], [], []>} : vector<2x1024xbf16>, vector<1024x128xbf16>, vector<2x128xf32> -> vector<2x128xf32>
    %c0_3 = arith.constant 0 : index
    %c0_4 = arith.constant 0 : index
    %3 = vector.load %arg3[%c0_3, %c0_4] : memref<1x128xf32, #tpu.memory_space<vmem>>, vector<1x128xf32>
    %4 = vector.broadcast %3 : vector<1x128xf32> to vector<2x128xf32>
    %5 = arith.addf %2, %4 : vector<2x128xf32>
    %cst_5 = arith.constant 0.000000e+00 : f32
    %6 = vector.broadcast %cst_5 : f32 to vector<2x128xf32>
    %7 = arith.maximumf %5, %6 : vector<2x128xf32>
    %8 = arith.truncf %7 : vector<2x128xf32> to vector<2x128xbf16>
    %c0_6 = arith.constant 0 : index
    %c0_7 = arith.constant 0 : index
    %9 = vector.load %arg4[%c0_6, %c0_7] : memref<128x128xbf16, #tpu.memory_space<vmem>>, vector<128x128xbf16>
    %cst_8 = arith.constant dense<0.000000e+00> : vector<2x128xf32>
    %10 = tpu.matmul %8, %9, %cst_8 {dimension_numbers = #tpu.dot_dimension_numbers<[1], [0], [0], [1], [0, 0, 1, 1], [], []>} : vector<2x128xbf16>, vector<128x128xbf16>, vector<2x128xf32> -> vector<2x128xf32>
    %c0_9 = arith.constant 0 : index
    %c0_10 = arith.constant 0 : index
    %11 = vector.load %arg5[%c0_9, %c0_10] : memref<1x128xf32, #tpu.memory_space<vmem>>, vector<1x128xf32>
    %12 = vector.broadcast %11 : vector<1x128xf32> to vector<2x128xf32>
    %13 = arith.addf %10, %12 : vector<2x128xf32>
    %14 = tpu.iota {dimensions = array<i32: 1>} : vector<2x128xi32>
    %c8_i32 = arith.constant 8 : i32
    %15 = vector.broadcast %c8_i32 : i32 to vector<2x128xi32>
    %16 = arith.subi %14, %15 : vector<2x128xi32>
    %c0_i32 = arith.constant 0 : i32
    %17 = vector.broadcast %c0_i32 : i32 to vector<2x128xi32>
    %18 = arith.cmpi sge, %16, %17 : vector<2x128xi32>
    %c64_i32 = arith.constant 64 : i32
    %19 = vector.broadcast %c64_i32 : i32 to vector<2x128xi32>
    %20 = arith.cmpi slt, %16, %19 : vector<2x128xi32>
    %21 = arith.andi %18, %20 : vector<2x128xi1>
    %c9_i32 = arith.constant 9 : i32
    %c0_i32_11 = arith.constant 0 : i32
    %22 = arith.cmpi eq, %c9_i32, %c0_i32_11 : i32
    %c1_i32 = arith.constant 1 : i32
    %23 = arith.select %22, %c1_i32, %c9_i32 : i32
    %24 = vector.broadcast %23 : i32 to vector<2x128xi32>
    %25 = arith.remsi %16, %24 : vector<2x128xi32>
    %c0_i32_12 = arith.constant 0 : i32
    %26 = vector.broadcast %c0_i32_12 : i32 to vector<2x128xi32>
    %27 = arith.cmpi ne, %25, %26 : vector<2x128xi32>
    %c0_i32_13 = arith.constant 0 : i32
    %28 = vector.broadcast %c0_i32_13 : i32 to vector<2x128xi32>
    %29 = arith.cmpi slt, %25, %28 : vector<2x128xi32>
    %c0_i32_14 = arith.constant 0 : i32
    %30 = arith.cmpi slt, %23, %c0_i32_14 : i32
    %31 = vector.broadcast %30 : i1 to vector<2x128xi1>
    %32 = vector.broadcast %31 : vector<2x128xi1> to vector<2x128xi1>
    %33 = arith.xori %29, %32 : vector<2x128xi1>
    %34 = arith.andi %33, %27 : vector<2x128xi1>
    %35 = vector.broadcast %23 : i32 to vector<2x128xi32>
    %36 = arith.addi %25, %35 : vector<2x128xi32>
    %37 = arith.select %34, %36, %25 : vector<2x128xi1>, vector<2x128xi32>
    %c0_i32_15 = arith.constant 0 : i32
    %38 = vector.broadcast %c0_i32_15 : i32 to vector<2x128xi32>
    %39 = arith.cmpi eq, %37, %38 : vector<2x128xi32>
    %40 = arith.andi %21, %39 : vector<2x128xi1>
    %41 = math.exp %13 : vector<2x128xf32>
    %42 = arith.select %40, %41, %13 : vector<2x128xi1>, vector<2x128xf32>
    %c0_16 = arith.constant 0 : index
    %c0_17 = arith.constant 0 : index
    %43 = vector.load %arg6[%c0_16, %c0_17] : memref<2x128xf32, #tpu.memory_space<vmem>>, vector<2x128xf32>
    tpu.vector_store %arg6[%c0_16, %c0_17], %42 {strides = array<i32>} : memref<2x128xf32, #tpu.memory_space<vmem>>, vector<2x128xf32>,
    return
  }
  func.func @transform_0(%arg0: i32) -> (i32, i32) {
    %c0_i32 = arith.constant 0 : i32
    %c0_i32_0 = arith.constant 0 : i32
    return %arg0, %c0_i32 : i32, i32
  }
  func.func @transform_1(%arg0: i32) -> (i32, i32) {
    %c0_i32 = arith.constant 0 : i32
    %c0_i32_0 = arith.constant 0 : i32
    %c0_i32_1 = arith.constant 0 : i32
    return %c0_i32, %c0_i32_0 : i32, i32
  }
  func.func @transform_2(%arg0: i32) -> (i32, i32) {
    %c0_i32 = arith.constant 0 : i32
    %c0_i32_0 = arith.constant 0 : i32
    %c0_i32_1 = arith.constant 0 : i32
    return %c0_i32, %c0_i32_0 : i32, i32
  }
  func.func @transform_3(%arg0: i32) -> (i32, i32) {
    %c0_i32 = arith.constant 0 : i32
    %c0_i32_0 = arith.constant 0 : i32
    %c0_i32_1 = arith.constant 0 : i32
    return %c0_i32, %c0_i32_0 : i32, i32
  }
  func.func @transform_4(%arg0: i32) -> (i32, i32) {
    %c0_i32 = arith.constant 0 : i32
    %c0_i32_0 = arith.constant 0 : i32
    %c0_i32_1 = arith.constant 0 : i32
    return %c0_i32, %c0_i32_0 : i32, i32
  }
  func.func @transform_5(%arg0: i32) -> (i32, i32) {
    %c0_i32 = arith.constant 0 : i32
    %c0_i32_0 = arith.constant 0 : i32
    return %arg0, %c0_i32 : i32, i32
  }
}

</mosaic_0001>

<llo_original>
// kernel: tpu_custom_call.1
$region0: #{tpu_custom_call.1}
  #allocation0 [shape = 'u32[]', space=smem, size = 0x4, offset = 0x4, fixed_abs, tag = 'smem constant byte address 0x4 - core index']
  #allocation1 [shape = 'u32[144,128]{1,0:T(1,128)}', space=vmem, size = 0x12000, scoped, tag = 'internal scratch']
  %s0 = inlined_call_operand.hbm [shape: bf16[2,1024], index: 0, kind: input, shape index: {}]
  %s1 = inlined_call_operand.hbm [shape: bf16[1024,128], index: 1, kind: input, shape index: {}]
  %s2 = inlined_call_operand.vmem [shape: f32[1,128], index: 2, kind: input, shape index: {}]
  %s3 = inlined_call_operand.hbm [shape: bf16[128,128], index: 3, kind: input, shape index: {}]
  %s4 = inlined_call_operand.vmem [shape: f32[1,128], index: 4, kind: input, shape index: {}]
  %s5 = inlined_call_operand.hbm [shape: f32[2,128], index: 5, kind: output, shape index: {}]
  %s6 = sld [smem:[#allocation0]]
  $region42: #{tpu_custom_call.1} parent=0
    _
  %s8 = ssub.s32 1, %s6
  %s9 = scalar_select 0, %s8, %s6
  $region1: #{tpu_custom_call.1} parent=0
    #allocation2 [shape = 'u8[4096]{0}', space=vmem, size = 0x1000, scoped, tag = 'input window, operand 0, single buffered']
    #allocation3 [shape = 's32[1]{0}', space=sflag, size = 0x4, scoped, tag = 'scoped memory for tpu_custom_call.1']
    #allocation4 [shape = 's32[1]{0}', space=sflag, size = 0x4, scoped, tag = 'scoped memory for tpu_custom_call.1']
    #allocation5 [shape = 'u8[262144]{0}', space=vmem, size = 0x40000, scoped, tag = 'input window, operand 1, single buffered']
    #allocation6 [shape = 's32[1]{0}', space=sflag, size = 0x4, scoped, tag = 'scoped memory for tpu_custom_call.1']
    #allocation7 [shape = 'u8[32768]{0}', space=vmem, size = 0x8000, scoped, tag = 'input window, operand 3, single buffered']
    #allocation8 [shape = 'u8[1024]{0}', space=vmem, size = 0x400, scoped, tag = 'output window, operand 0, single buffered']
    %10 = vsyncpa [#allocation3], 0
    %11 = vsyncpa [#allocation6], 0
    %12 = vsyncpa [#allocation4], 0
    // Predicated region
    $region2: #{tpu_custom_call.1} parent=1 // pred_check
      _
    $region3: #{tpu_custom_call.1} parent=1 // pred_check_branch
      %14 = sbr.rel (0) target = $region5
    $region4: #{tpu_custom_call.1} parent=1 // pred_region
      %s16 = ssub.s32 128, 128
      %17 = vsyncadd [#allocation3], %s16
      %s19 = sshll.u32 [#allocation2], 4
      %s20 = int_to_ptr.vmem [resolvable:$true] %s19
      %22 = dma.hbm_to_vmem [thread:$0]  %s0, 128, %s20, [#allocation3]
    $region5: #{tpu_custom_call.1} parent=1 // pred_fallthru
      _
    // Predicated region
    $region6: #{tpu_custom_call.1} parent=1 // pred_check
      _
    $region7: #{tpu_custom_call.1} parent=1 // pred_check_branch
      %24 = sbr.rel (0) target = $region9
    $region8: #{tpu_custom_call.1} parent=1 // pred_region
      %s26 = ssub.s32 8192, 8192
      %27 = vsyncadd [#allocation6], %s26
      %s28 = sshll.u32 [#allocation5], 4
      %s29 = int_to_ptr.vmem [resolvable:$true] %s28
      %34 = dma.hbm_to_vmem [thread:$0]  %s1, 8192, %s29, [#allocation6], 64, 64, 4
    $region9: #{tpu_custom_call.1} parent=1 // pred_fallthru
      _
    // Predicated region
    $region10: #{tpu_custom_call.1} parent=1 // pred_check
      _
    $region11: #{tpu_custom_call.1} parent=1 // pred_check_branch
      %36 = sbr.rel (0) target = $region13
    $region12: #{tpu_custom_call.1} parent=1 // pred_region
      _
    $region13: #{tpu_custom_call.1} parent=1 // pred_fallthru
      _
    // Predicated region
    $region14: #{tpu_custom_call.1} parent=1 // pred_check
      _
    $region15: #{tpu_custom_call.1} parent=1 // pred_check_branch
      %38 = sbr.rel (0) target = $region17
    $region16: #{tpu_custom_call.1} parent=1 // pred_region
      %s40 = ssub.s32 1024, 1024
      %41 = vsyncadd [#allocation6], %s40
      %s42 = sshll.u32 [#allocation7], 4
      %s43 = int_to_ptr.vmem [resolvable:$true] %s42
      %48 = dma.hbm_to_vmem [thread:$0]  %s3, 1024, %s43, [#allocation6], 64, 64, 4
    $region17: #{tpu_custom_call.1} parent=1 // pred_fallthru
      _
    // Predicated region
    $region18: #{tpu_custom_call.1} parent=1 // pred_check
      _
    $region19: #{tpu_custom_call.1} parent=1 // pred_check_branch
      %50 = sbr.rel (0) target = $region21
    $region20: #{tpu_custom_call.1} parent=1 // pred_region
      _
    $region21: #{tpu_custom_call.1} parent=1 // pred_fallthru
      _
    // Predicated region
    $region22: #{tpu_custom_call.1} parent=1 // pred_check
      _
    $region23: #{tpu_custom_call.1} parent=1 // pred_check_branch
      %52 = sbr.rel (0) target = $region25
    $region24: #{tpu_custom_call.1} parent=1 // pred_region
      %53 = dma.done [#allocation3], 128
    $region25: #{tpu_custom_call.1} parent=1 // pred_fallthru
      _
    // Predicated region
    $region26: #{tpu_custom_call.1} parent=1 // pred_check
      _
    $region27: #{tpu_custom_call.1} parent=1 // pred_check_branch
      %55 = sbr.rel (0) target = $region29
    $region28: #{tpu_custom_call.1} parent=1 // pred_region
      %56 = dma.done [#allocation6], 8192
    $region29: #{tpu_custom_call.1} parent=1 // pred_fallthru
      _
    // Predicated region
    $region30: #{tpu_custom_call.1} parent=1 // pred_check
      _
    $region31: #{tpu_custom_call.1} parent=1 // pred_check_branch
      %58 = sbr.rel (0) target = $region33
    $region32: #{tpu_custom_call.1} parent=1 // pred_region
      %59 = dma.done [#allocation6], 1024
    $region33: #{tpu_custom_call.1} parent=1 // pred_fallthru
      _
    %v61 = vld [vmem:[#allocation2] sm:$0xff]
    %v62 = vld [vmem:[#allocation5] sm:$0xf]
    %v63 = vld [vmem:[#allocation5 + $0x4] sm:$0xf]
    %v64 = vld [vmem:[#allocation5 + $0x8] sm:$0xf]
    %v65 = vld [vmem:[#allocation5 + $0xc] sm:$0xf]
    %v66 = vld [vmem:[#allocation5 + $0x10] sm:$0xf]
    %v67 = vld [vmem:[#allocation5 + $0x14] sm:$0xf]
    %v68 = vld [vmem:[#allocation5 + $0x18] sm:$0xf]
    %v69 = vld [vmem:[#allocation5 + $0x1c] sm:$0xf]
    %v70 = vld [vmem:[#allocation5 + $0x20] sm:$0xf]
    %v71 = vld [vmem:[#allocation5 + $0x24] sm:$0xf]
    %v72 = vld [vmem:[#allocation5 + $0x28] sm:$0xf]
    %v73 = vld [vmem:[#allocation5 + $0x2c] sm:$0xf]
    %v74 = vld [vmem:[#allocation5 + $0x30] sm:$0xf]
    %v75 = vld [vmem:[#allocation5 + $0x34] sm:$0xf]
    %v76 = vld [vmem:[#allocation5 + $0x38] sm:$0xf]
    %v77 = vld [vmem:[#allocation5 + $0x3c] sm:$0xf]
    %v78 = vld [vmem:[#allocation5 + $0x40] sm:$0xf]
    %v79 = vld [vmem:[#allocation5 + $0x44] sm:$0xf]
    %v80 = vld [vmem:[#allocation5 + $0x48] sm:$0xf]
    %v81 = vld [vmem:[#allocation5 + $0x4c] sm:$0xf]
    %v82 = vld [vmem:[#allocation5 + $0x50] sm:$0xf]
    %v83 = vld [vmem:[#allocation5 + $0x54] sm:$0xf]
    %v84 = vld [vmem:[#allocation5 + $0x58] sm:$0xf]
    %v85 = vld [vmem:[#allocation5 + $0x5c] sm:$0xf]
    %v86 = vld [vmem:[#allocation5 + $0x60] sm:$0xf]
    %v87 = vld [vmem:[#allocation5 + $0x64] sm:$0xf]
    %v88 = vld [vmem:[#allocation5 + $0x68] sm:$0xf]
    %v89 = vld [vmem:[#allocation5 + $0x6c] sm:$0xf]
    %v90 = vld [vmem:[#allocation5 + $0x70] sm:$0xf]
    %v91 = vld [vmem:[#allocation5 + $0x74] sm:$0xf]
    %v92 = vld [vmem:[#allocation5 + $0x78] sm:$0xf]
    %v93 = vld [vmem:[#allocation5 + $0x7c] sm:$0xf]
    %v94 = vld [vmem:[#allocation5 + $0x80] sm:$0xf]
    %v95 = vld [vmem:[#allocation5 + $0x84] sm:$0xf]
    %v96 = vld [vmem:[#allocation5 + $0x88] sm:$0xf]
    %v97 = vld [vmem:[#allocation5 + $0x8c] sm:$0xf]
    %v98 = vld [vmem:[#allocation5 + $0x90] sm:$0xf]
    %v99 = vld [vmem:[#allocation5 + $0x94] sm:$0xf]
    %v100 = vld [vmem:[#allocation5 + $0x98] sm:$0xf]
    %v101 = vld [vmem:[#allocation5 + $0x9c] sm:$0xf]
    %v102 = vld [vmem:[#allocation5 + $0xa0] sm:$0xf]
    %v103 = vld [vmem:[#allocation5 + $0xa4] sm:$0xf]
    %v104 = vld [vmem:[#allocation5 + $0xa8] sm:$0xf]
    %v105 = vld [vmem:[#allocation5 + $0xac] sm:$0xf]
    %v106 = vld [vmem:[#allocation5 + $0xb0] sm:$0xf]
    %v107 = vld [vmem:[#allocation5 + $0xb4] sm:$0xf]
    %v108 = vld [vmem:[#allocation5 + $0xb8] sm:$0xf]
    %v109 = vld [vmem:[#allocation5 + $0xbc] sm:$0xf]
    %v110 = vld [vmem:[#allocation5 + $0xc0] sm:$0xf]
    %v111 = vld [vmem:[#allocation5 + $0xc4] sm:$0xf]
    %v112 = vld [vmem:[#allocation5 + $0xc8] sm:$0xf]
    %v113 = vld [vmem:[#allocation5 + $0xcc] sm:$0xf]
    %v114 = vld [vmem:[#allocation5 + $0xd0] sm:$0xf]
    %v115 = vld [vmem:[#allocation5 + $0xd4] sm:$0xf]
    %v116 = vld [vmem:[#allocation5 + $0xd8] sm:$0xf]
    %v117 = vld [vmem:[#allocation5 + $0xdc] sm:$0xf]
    %v118 = vld [vmem:[#allocation5 + $0xe0] sm:$0xf]
    %v119 = vld [vmem:[#allocation5 + $0xe4] sm:$0xf]
    %v120 = vld [vmem:[#allocation5 + $0xe8] sm:$0xf]
    %v121 = vld [vmem:[#allocation5 + $0xec] sm:$0xf]
    %v122 = vld [vmem:[#allocation5 + $0xf0] sm:$0xf]
    %v123 = vld [vmem:[#allocation5 + $0xf4] sm:$0xf]
    %v124 = vld [vmem:[#allocation5 + $0xf8] sm:$0xf]
    %v125 = vld [vmem:[#allocation5 + $0xfc] sm:$0xf]
    %v126 = vld [vmem:[#allocation5 + $0x100] sm:$0xf]
    %v127 = vld [vmem:[#allocation5 + $0x104] sm:$0xf]
    %v128 = vld [vmem:[#allocation5 + $0x108] sm:$0xf]
    %v129 = vld [vmem:[#allocation5 + $0x10c] sm:$0xf]
    %v130 = vld [vmem:[#allocation5 + $0x110] sm:$0xf]
    %v131 = vld [vmem:[#allocation5 + $0x114] sm:$0xf]
    %v132 = vld [vmem:[#allocation5 + $0x118] sm:$0xf]
    %v133 = vld [vmem:[#allocation5 + $0x11c] sm:$0xf]
    %v134 = vld [vmem:[#allocation5 + $0x120] sm:$0xf]
    %v135 = vld [vmem:[#allocation5 + $0x124] sm:$0xf]
    %v136 = vld [vmem:[#allocation5 + $0x128] sm:$0xf]
    %v137 = vld [vmem:[#allocation5 + $0x12c] sm:$0xf]
    %v138 = vld [vmem:[#allocation5 + $0x130] sm:$0xf]
    %v139 = vld [vmem:[#allocation5 + $0x134] sm:$0xf]
    %v140 = vld [vmem:[#allocation5 + $0x138] sm:$0xf]
    %v141 = vld [vmem:[#allocation5 + $0x13c] sm:$0xf]
    %v142 = vld [vmem:[#allocation5 + $0x140] sm:$0xf]
    %v143 = vld [vmem:[#allocation5 + $0x144] sm:$0xf]
    %v144 = vld [vmem:[#allocation5 + $0x148] sm:$0xf]
    %v145 = vld [vmem:[#allocation5 + $0x14c] sm:$0xf]
    %v146 = vld [vmem:[#allocation5 + $0x150] sm:$0xf]
    %v147 = vld [vmem:[#allocation5 + $0x154] sm:$0xf]
    %v148 = vld [vmem:[#allocation5 + $0x158] sm:$0xf]
    %v149 = vld [vmem:[#allocation5 + $0x15c] sm:$0xf]
    %v150 = vld [vmem:[#allocation5 + $0x160] sm:$0xf]
    %v151 = vld [vmem:[#allocation5 + $0x164] sm:$0xf]
    %v152 = vld [vmem:[#allocation5 + $0x168] sm:$0xf]
    %v153 = vld [vmem:[#allocation5 + $0x16c] sm:$0xf]
    %v154 = vld [vmem:[#allocation5 + $0x170] sm:$0xf]
    %v155 = vld [vmem:[#allocation5 + $0x174] sm:$0xf]
    %v156 = vld [vmem:[#allocation5 + $0x178] sm:$0xf]
    %v157 = vld [vmem:[#allocation5 + $0x17c] sm:$0xf]
    %v158 = vld [vmem:[#allocation5 + $0x180] sm:$0xf]
    %v159 = vld [vmem:[#allocation5 + $0x184] sm:$0xf]
    %v160 = vld [vmem:[#allocation5 + $0x188] sm:$0xf]
    %v161 = vld [vmem:[#allocation5 + $0x18c] sm:$0xf]
    %v162 = vld [vmem:[#allocation5 + $0x190] sm:$0xf]
    %v163 = vld [vmem:[#allocation5 + $0x194] sm:$0xf]
    %v164 = vld [vmem:[#allocation5 + $0x198] sm:$0xf]
    %v165 = vld [vmem:[#allocation5 + $0x19c] sm:$0xf]
    %v166 = vld [vmem:[#allocation5 + $0x1a0] sm:$0xf]
    %v167 = vld [vmem:[#allocation5 + $0x1a4] sm:$0xf]
    %v168 = vld [vmem:[#allocation5 + $0x1a8] sm:$0xf]
    %v169 = vld [vmem:[#allocation5 + $0x1ac] sm:$0xf]
    %v170 = vld [vmem:[#allocation5 + $0x1b0] sm:$0xf]
    %v171 = vld [vmem:[#allocation5 + $0x1b4] sm:$0xf]
    %v172 = vld [vmem:[#allocation5 + $0x1b8] sm:$0xf]
    %v173 = vld [vmem:[#allocation5 + $0x1bc] sm:$0xf]
    %v174 = vld [vmem:[#allocation5 + $0x1c0] sm:$0xf]
    %v175 = vld [vmem:[#allocation5 + $0x1c4] sm:$0xf]
    %v176 = vld [vmem:[#allocation5 + $0x1c8] sm:$0xf]
    %v177 = vld [vmem:[#allocation5 + $0x1cc] sm:$0xf]
    %v178 = vld [vmem:[#allocation5 + $0x1d0] sm:$0xf]
    %v179 = vld [vmem:[#allocation5 + $0x1d4] sm:$0xf]
    %v180 = vld [vmem:[#allocation5 + $0x1d8] sm:$0xf]
    %v181 = vld [vmem:[#allocation5 + $0x1dc] sm:$0xf]
    %v182 = vld [vmem:[#allocation5 + $0x1e0] sm:$0xf]
    %v183 = vld [vmem:[#allocation5 + $0x1e4] sm:$0xf]
    %v184 = vld [vmem:[#allocation5 + $0x1e8] sm:$0xf]
    %v185 = vld [vmem:[#allocation5 + $0x1ec] sm:$0xf]
    %v186 = vld [vmem:[#allocation5 + $0x1f0] sm:$0xf]
    %v187 = vld [vmem:[#allocation5 + $0x1f4] sm:$0xf]
    %v188 = vld [vmem:[#allocation5 + $0x1f8] sm:$0xf]
    %v189 = vld [vmem:[#allocation5 + $0x1fc] sm:$0xf]
    %v190 = vld [vmem:[%s2] sm:$0x1]
    %v192 = vlaneseq
    %v193 = vshrl.u32 %v192, 7
    %v194 = vsub.s32 0, %v193
    %v195 = vrot.slane %v190, %v194
    %v198 = vcombine.high %v61, %v61
    %v200 = vunpack.c.l.s4 1966171168
    %v201 = vunpack.c.0.s8 %v200
    %v202 = vlaneseq
    %v203 = vshrl.u32 %v202, 7
    %v204 = vsub.s32 %v201, %v203
    %v205 = vrot.slane %v61, %v204
    %v207 = vunpack.c.l.s4 1966171168
    %v208 = vunpack.c.0.s8 %v207
    %v209 = vlaneseq
    %v210 = vshrl.u32 %v209, 7
    %v211 = vsub.s32 %v208, %v210
    %v212 = vrot.slane %v198, %v211
    %v213 = vcombine.high %v205, %v205
    %v214 = vcombine.high %v212, %v212
    %v216 = vunpack.c.l.s4 1966171168
    %v217 = vunpack.c.0.s8 %v216
    %v218 = vlaneseq
    %v219 = vshrl.u32 %v218, 7
    %v220 = vsub.s32 %v217, %v219
    %v221 = vrot.slane %v205, %v220
    %v223 = vunpack.c.l.s4 1966171168
    %v224 = vunpack.c.0.s8 %v223
    %v225 = vlaneseq
    %v226 = vshrl.u32 %v225, 7
    %v227 = vsub.s32 %v224, %v226
    %v228 = vrot.slane %v212, %v227
    %v230 = vunpack.c.l.s4 1966171168
    %v231 = vunpack.c.0.s8 %v230
    %v232 = vlaneseq
    %v233 = vshrl.u32 %v232, 7
    %v234 = vsub.s32 %v231, %v233
    %v235 = vrot.slane %v213, %v234
    %v237 = vunpack.c.l.s4 1966171168
    %v238 = vunpack.c.0.s8 %v237
    %v239 = vlaneseq
    %v240 = vshrl.u32 %v239, 7
    %v241 = vsub.s32 %v238, %v240
    %v242 = vrot.slane %v214, %v241
    %v243 = vcombine.high %v221, %v221
    %v244 = vcombine.high %v228, %v228
    %v245 = vcombine.high %v235, %v235
    %v246 = vcombine.high %v242, %v242
    %v383 = vunpack.c.l.b16 %v62
    %v384 = vunpack.c.l.b16 %v63
    %v385 = vunpack.c.l.b16 %v64
    %v386 = vunpack.c.l.b16 %v65
    %v387 = vunpack.c.l.b16 %v66
    %v388 = vunpack.c.l.b16 %v67
    %v389 = vunpack.c.l.b16 %v68
    %v390 = vunpack.c.l.b16 %v69
    %v391 = vunpack.c.l.b16 %v70
    %v392 = vunpack.c.l.b16 %v71
    %v393 = vunpack.c.l.b16 %v72
    %v394 = vunpack.c.l.b16 %v73
    %v395 = vunpack.c.l.b16 %v74
    %v396 = vunpack.c.l.b16 %v75
    %v397 = vunpack.c.l.b16 %v76
    %v398 = vunpack.c.l.b16 %v77
    %v399 = vunpack.c.l.b16 %v78
    %v400 = vunpack.c.l.b16 %v79
    %v401 = vunpack.c.l.b16 %v80
    %v402 = vunpack.c.l.b16 %v81
    %v403 = vunpack.c.l.b16 %v82
    %v404 = vunpack.c.l.b16 %v83
    %v405 = vunpack.c.l.b16 %v84
    %v406 = vunpack.c.l.b16 %v85
    %v407 = vunpack.c.l.b16 %v86
    %v408 = vunpack.c.l.b16 %v87
    %v409 = vunpack.c.l.b16 %v88
    %v410 = vunpack.c.l.b16 %v89
    %v411 = vunpack.c.l.b16 %v90
    %v412 = vunpack.c.l.b16 %v91
    %v413 = vunpack.c.l.b16 %v92
    %v414 = vunpack.c.l.b16 %v93
    %v415 = vunpack.c.l.b16 %v94
    %v416 = vunpack.c.l.b16 %v95
    %v417 = vunpack.c.l.b16 %v96
    %v418 = vunpack.c.l.b16 %v97
    %v419 = vunpack.c.l.b16 %v98
    %v420 = vunpack.c.l.b16 %v99
    %v421 = vunpack.c.l.b16 %v100
    %v422 = vunpack.c.l.b16 %v101
    %v423 = vunpack.c.l.b16 %v102
    %v424 = vunpack.c.l.b16 %v103
    %v425 = vunpack.c.l.b16 %v104
    %v426 = vunpack.c.l.b16 %v105
    %v427 = vunpack.c.l.b16 %v106
    %v428 = vunpack.c.l.b16 %v107
    %v429 = vunpack.c.l.b16 %v108
    %v430 = vunpack.c.l.b16 %v109
    %v431 = vunpack.c.l.b16 %v110
    %v432 = vunpack.c.l.b16 %v111
    %v433 = vunpack.c.l.b16 %v112
    %v434 = vunpack.c.l.b16 %v113
    %v435 = vunpack.c.l.b16 %v114
    %v436 = vunpack.c.l.b16 %v115
    %v437 = vunpack.c.l.b16 %v116
    %v438 = vunpack.c.l.b16 %v117
    %v439 = vunpack.c.l.b16 %v118
    %v440 = vunpack.c.l.b16 %v119
    %v441 = vunpack.c.l.b16 %v120
    %v442 = vunpack.c.l.b16 %v121
    %v443 = vunpack.c.l.b16 %v122
    %v444 = vunpack.c.l.b16 %v123
    %v445 = vunpack.c.l.b16 %v124
    %v446 = vunpack.c.l.b16 %v125
    %v447 = vunpack.c.l.b16 %v126
    %v448 = vunpack.c.l.b16 %v127
    %v449 = vunpack.c.l.b16 %v128
    %v450 = vunpack.c.l.b16 %v129
    %v451 = vunpack.c.l.b16 %v130
    %v452 = vunpack.c.l.b16 %v131
    %v453 = vunpack.c.l.b16 %v132
    %v454 = vunpack.c.l.b16 %v133
    %v455 = vunpack.c.l.b16 %v134
    %v456 = vunpack.c.l.b16 %v135
    %v457 = vunpack.c.l.b16 %v136
    %v458 = vunpack.c.l.b16 %v137
    %v459 = vunpack.c.l.b16 %v138
    %v460 = vunpack.c.l.b16 %v139
    %v461 = vunpack.c.l.b16 %v140
    %v462 = vunpack.c.l.b16 %v141
    %v463 = vunpack.c.l.b16 %v142
    %v464 = vunpack.c.l.b16 %v143
    %v465 = vunpack.c.l.b16 %v144
    %v466 = vunpack.c.l.b16 %v145
    %v467 = vunpack.c.l.b16 %v146
    %v468 = vunpack.c.l.b16 %v147
    %v469 = vunpack.c.l.b16 %v148
    %v470 = vunpack.c.l.b16 %v149
    %v471 = vunpack.c.l.b16 %v150
    %v472 = vunpack.c.l.b16 %v151
    %v473 = vunpack.c.l.b16 %v152
    %v474 = vunpack.c.l.b16 %v153
    %v475 = vunpack.c.l.b16 %v154
    %v476 = vunpack.c.l.b16 %v155
    %v477 = vunpack.c.l.b16 %v156
    %v478 = vunpack.c.l.b16 %v157
    %v479 = vunpack.c.l.b16 %v158
    %v480 = vunpack.c.l.b16 %v159
    %v481 = vunpack.c.l.b16 %v160
    %v482 = vunpack.c.l.b16 %v161
    %v483 = vunpack.c.l.b16 %v162
    %v484 = vunpack.c.l.b16 %v163
    %v485 = vunpack.c.l.b16 %v164
    %v486 = vunpack.c.l.b16 %v165
    %v487 = vunpack.c.l.b16 %v166
    %v488 = vunpack.c.l.b16 %v167
    %v489 = vunpack.c.l.b16 %v168
    %v490 = vunpack.c.l.b16 %v169
    %v491 = vunpack.c.l.b16 %v170
    %v492 = vunpack.c.l.b16 %v171
    %v493 = vunpack.c.l.b16 %v172
    %v494 = vunpack.c.l.b16 %v173
    %v495 = vunpack.c.l.b16 %v174
    %v496 = vunpack.c.l.b16 %v175
    %v497 = vunpack.c.l.b16 %v176
    %v498 = vunpack.c.l.b16 %v177
    %v499 = vunpack.c.l.b16 %v178
    %v500 = vunpack.c.l.b16 %v179
    %v501 = vunpack.c.l.b16 %v180
    %v502 = vunpack.c.l.b16 %v181
    %v503 = vunpack.c.l.b16 %v182
    %v504 = vunpack.c.l.b16 %v183
    %v505 = vunpack.c.l.b16 %v184
    %v506 = vunpack.c.l.b16 %v185
    %v507 = vunpack.c.l.b16 %v186
    %v508 = vunpack.c.l.b16 %v187
    %v509 = vunpack.c.l.b16 %v188
    %v510 = vunpack.c.l.b16 %v189
    %v511 = vpack.c.b16 %v384, %v383
    %v512 = vpack.c.b16 %v386, %v385
    %v513 = vpack.c.b16 %v388, %v387
    %v514 = vpack.c.b16 %v390, %v389
    %v515 = vpack.c.b16 %v392, %v391
    %v516 = vpack.c.b16 %v394, %v393
    %v517 = vpack.c.b16 %v396, %v395
    %v518 = vpack.c.b16 %v398, %v397
    %v519 = vpack.c.b16 %v400, %v399
    %v520 = vpack.c.b16 %v402, %v401
    %v521 = vpack.c.b16 %v404, %v403
    %v522 = vpack.c.b16 %v406, %v405
    %v523 = vpack.c.b16 %v408, %v407
    %v524 = vpack.c.b16 %v410, %v409
    %v525 = vpack.c.b16 %v412, %v411
    %v526 = vpack.c.b16 %v414, %v413
    %v527 = vpack.c.b16 %v416, %v415
    %v528 = vpack.c.b16 %v418, %v417
    %v529 = vpack.c.b16 %v420, %v419
    %v530 = vpack.c.b16 %v422, %v421
    %v531 = vpack.c.b16 %v424, %v423
    %v532 = vpack.c.b16 %v426, %v425
    %v533 = vpack.c.b16 %v428, %v427
    %v534 = vpack.c.b16 %v430, %v429
    %v535 = vpack.c.b16 %v432, %v431
    %v536 = vpack.c.b16 %v434, %v433
    %v537 = vpack.c.b16 %v436, %v435
    %v538 = vpack.c.b16 %v438, %v437
    %v539 = vpack.c.b16 %v440, %v439
    %v540 = vpack.c.b16 %v442, %v441
    %v541 = vpack.c.b16 %v444, %v443
    %v542 = vpack.c.b16 %v446, %v445
    %v543 = vpack.c.b16 %v448, %v447
    %v544 = vpack.c.b16 %v450, %v449
    %v545 = vpack.c.b16 %v452, %v451
    %v546 = vpack.c.b16 %v454, %v453
    %v547 = vpack.c.b16 %v456, %v455
    %v548 = vpack.c.b16 %v458, %v457
    %v549 = vpack.c.b16 %v460, %v459
    %v550 = vpack.c.b16 %v462, %v461
    %v551 = vpack.c.b16 %v464, %v463
    %v552 = vpack.c.b16 %v466, %v465
    %v553 = vpack.c.b16 %v468, %v467
    %v554 = vpack.c.b16 %v470, %v469
    %v555 = vpack.c.b16 %v472, %v471
    %v556 = vpack.c.b16 %v474, %v473
    %v557 = vpack.c.b16 %v476, %v475
    %v558 = vpack.c.b16 %v478, %v477
    %v559 = vpack.c.b16 %v480, %v479
    %v560 = vpack.c.b16 %v482, %v481
    %v561 = vpack.c.b16 %v484, %v483
    %v562 = vpack.c.b16 %v486, %v485
    %v563 = vpack.c.b16 %v488, %v487
    %v564 = vpack.c.b16 %v490, %v489
    %v565 = vpack.c.b16 %v492, %v491
    %v566 = vpack.c.b16 %v494, %v493
    %v567 = vpack.c.b16 %v496, %v495
    %v568 = vpack.c.b16 %v498, %v497
    %v569 = vpack.c.b16 %v500, %v499
    %v570 = vpack.c.b16 %v502, %v501
    %v571 = vpack.c.b16 %v504, %v503
    %v572 = vpack.c.b16 %v506, %v505
    %v573 = vpack.c.b16 %v508, %v507
    %v574 = vpack.c.b16 %v510, %v509
    %639 = vmatprep.subr.bf16.mxu0 0
    %640 = vmatpush1.bf16.msra.mxu0 %v518
    %641 = vmatprep.subr.bf16.mxu0 0
    %642 = vmatpush1.bf16.msra.mxu0 %v517
    %643 = vmatprep.subr.bf16.mxu0 0
    %644 = vmatpush1.bf16.msra.mxu0 %v516
    %645 = vmatprep.subr.bf16.mxu0 0
    %646 = vmatpush1.bf16.msra.mxu0 %v515
    %647 = vmatprep.subr.bf16.mxu0 0
    %648 = vmatpush1.bf16.msra.mxu0 %v514
    %649 = vmatprep.subr.bf16.mxu0 0
    %650 = vmatpush1.bf16.msra.mxu0 %v513
    %651 = vmatprep.subr.bf16.mxu0 0
    %652 = vmatpush1.bf16.msra.mxu0 %v512
    %653 = vmatprep.subr.bf16.mxu0 0
    %654 = vmatpush1.bf16.msra.mxu0 %v511
    %655 = vmatprep.subr.bf16.mxu0 0
    %656 = vmatpush2.bf16.msra.mxu0 %v526
    %657 = vmatprep.subr.bf16.mxu0 0
    %658 = vmatpush2.bf16.msra.mxu0 %v525
    %659 = vmatprep.subr.bf16.mxu0 0
    %660 = vmatpush2.bf16.msra.mxu0 %v524
    %661 = vmatprep.subr.bf16.mxu0 0
    %662 = vmatpush2.bf16.msra.mxu0 %v523
    %663 = vmatprep.subr.bf16.mxu0 0
    %664 = vmatpush2.bf16.msra.mxu0 %v522
    %665 = vmatprep.subr.bf16.mxu0 0
    %666 = vmatpush2.bf16.msra.mxu0 %v521
    %667 = vmatprep.subr.bf16.mxu0 0
    %668 = vmatpush2.bf16.msra.mxu0 %v520
    %669 = vmatprep.subr.bf16.mxu0 0
    %670 = vmatpush2.bf16.msra.mxu0 %v519
    %671 = vmatprep.mubr.bf16.mxu0 %v235
    %672 = vmatmul.mubr.bf16.gmra.mxu0 %v221
    %v673 = vpop.f32.mrf.mxu0
    %v674 = vadd.f32 %v195, %v673
    %v675 = vpop.f32.mrf.mxu0
    %v676 = vpop.f32.mrf.mxu0
    %v677 = vpop.f32.mrf.mxu0
    %678 = vdwg.mxu0
    %679 = vmatprep.subr.bf16.mxu0 0
    %680 = vmatpush1.bf16.msra.mxu0 %v534
    %681 = vmatprep.subr.bf16.mxu0 0
    %682 = vmatpush1.bf16.msra.mxu0 %v533
    %683 = vmatprep.subr.bf16.mxu0 0
    %684 = vmatpush1.bf16.msra.mxu0 %v532
    %685 = vmatprep.subr.bf16.mxu0 0
    %686 = vmatpush1.bf16.msra.mxu0 %v531
    %687 = vmatprep.subr.bf16.mxu0 0
    %688 = vmatpush1.bf16.msra.mxu0 %v530
    %689 = vmatprep.subr.bf16.mxu0 0
    %690 = vmatpush1.bf16.msra.mxu0 %v529
    %691 = vmatprep.subr.bf16.mxu0 0
    %692 = vmatpush1.bf16.msra.mxu0 %v528
    %693 = vmatprep.subr.bf16.mxu0 0
    %694 = vmatpush1.bf16.msra.mxu0 %v527
    %695 = vmatprep.subr.bf16.mxu0 0
    %696 = vmatpush2.bf16.msra.mxu0 %v542
    %697 = vmatprep.subr.bf16.mxu0 0
    %698 = vmatpush2.bf16.msra.mxu0 %v541
    %699 = vmatprep.subr.bf16.mxu0 0
    %700 = vmatpush2.bf16.msra.mxu0 %v540
    %701 = vmatprep.subr.bf16.mxu0 0
    %702 = vmatpush2.bf16.msra.mxu0 %v539
    %703 = vmatprep.subr.bf16.mxu0 0
    %704 = vmatpush2.bf16.msra.mxu0 %v538
    %705 = vmatprep.subr.bf16.mxu0 0
    %706 = vmatpush2.bf16.msra.mxu0 %v537
    %707 = vmatprep.subr.bf16.mxu0 0
    %708 = vmatpush2.bf16.msra.mxu0 %v536
    %709 = vmatprep.subr.bf16.mxu0 0
    %710 = vmatpush2.bf16.msra.mxu0 %v535
    %711 = vmatprep.mubr.bf16.mxu0 %v245
    %712 = vmatmul.mubr.bf16.gmra.mxu0 %v243
    %v713 = vpop.f32.mrf.mxu0
    %v714 = vadd.f32 %v674, %v713
    %v715 = vpop.f32.mrf.mxu0
    %v716 = vpop.f32.mrf.mxu0
    %v717 = vpop.f32.mrf.mxu0
    %718 = vdwg.mxu0
    %719 = vmatprep.subr.bf16.mxu0 0
    %720 = vmatpush1.bf16.msra.mxu0 %v550
    %721 = vmatprep.subr.bf16.mxu0 0
    %722 = vmatpush1.bf16.msra.mxu0 %v549
    %723 = vmatprep.subr.bf16.mxu0 0
    %724 = vmatpush1.bf16.msra.mxu0 %v548
    %725 = vmatprep.subr.bf16.mxu0 0
    %726 = vmatpush1.bf16.msra.mxu0 %v547
    %727 = vmatprep.subr.bf16.mxu0 0
    %728 = vmatpush1.bf16.msra.mxu0 %v546
    %729 = vmatprep.subr.bf16.mxu0 0
    %730 = vmatpush1.bf16.msra.mxu0 %v545
    %731 = vmatprep.subr.bf16.mxu0 0
    %732 = vmatpush1.bf16.msra.mxu0 %v544
    %733 = vmatprep.subr.bf16.mxu0 0
    %734 = vmatpush1.bf16.msra.mxu0 %v543
    %735 = vmatprep.subr.bf16.mxu0 0
    %736 = vmatpush2.bf16.msra.mxu0 %v558
    %737 = vmatprep.subr.bf16.mxu0 0
    %738 = vmatpush2.bf16.msra.mxu0 %v557
    %739 = vmatprep.subr.bf16.mxu0 0
    %740 = vmatpush2.bf16.msra.mxu0 %v556
    %741 = vmatprep.subr.bf16.mxu0 0
    %742 = vmatpush2.bf16.msra.mxu0 %v555
    %743 = vmatprep.subr.bf16.mxu0 0
    %744 = vmatpush2.bf16.msra.mxu0 %v554
    %745 = vmatprep.subr.bf16.mxu0 0
    %746 = vmatpush2.bf16.msra.mxu0 %v553
    %747 = vmatprep.subr.bf16.mxu0 0
    %748 = vmatpush2.bf16.msra.mxu0 %v552
    %749 = vmatprep.subr.bf16.mxu0 0
    %750 = vmatpush2.bf16.msra.mxu0 %v551
    %751 = vmatprep.mubr.bf16.mxu0 %v242
    %752 = vmatmul.mubr.bf16.gmra.mxu0 %v228
    %v753 = vpop.f32.mrf.mxu0
    %v754 = vadd.f32 %v714, %v753
    %v755 = vpop.f32.mrf.mxu0
    %v756 = vpop.f32.mrf.mxu0
    %v757 = vpop.f32.mrf.mxu0
    %758 = vdwg.mxu0
    %759 = vmatprep.subr.bf16.mxu0 0
    %760 = vmatpush1.bf16.msra.mxu0 %v566
    %761 = vmatprep.subr.bf16.mxu0 0
    %762 = vmatpush1.bf16.msra.mxu0 %v565
    %763 = vmatprep.subr.bf16.mxu0 0
    %764 = vmatpush1.bf16.msra.mxu0 %v564
    %765 = vmatprep.subr.bf16.mxu0 0
    %766 = vmatpush1.bf16.msra.mxu0 %v563
    %767 = vmatprep.subr.bf16.mxu0 0
    %768 = vmatpush1.bf16.msra.mxu0 %v562
    %769 = vmatprep.subr.bf16.mxu0 0
    %770 = vmatpush1.bf16.msra.mxu0 %v561
    %771 = vmatprep.subr.bf16.mxu0 0
    %772 = vmatpush1.bf16.msra.mxu0 %v560
    %773 = vmatprep.subr.bf16.mxu0 0
    %774 = vmatpush1.bf16.msra.mxu0 %v559
    %775 = vmatprep.subr.bf16.mxu0 0
    %776 = vmatpush2.bf16.msra.mxu0 %v574
    %777 = vmatprep.subr.bf16.mxu0 0
    %778 = vmatpush2.bf16.msra.mxu0 %v573
    %779 = vmatprep.subr.bf16.mxu0 0
    %780 = vmatpush2.bf16.msra.mxu0 %v572
    %781 = vmatprep.subr.bf16.mxu0 0
    %782 = vmatpush2.bf16.msra.mxu0 %v571
    %783 = vmatprep.subr.bf16.mxu0 0
    %784 = vmatpush2.bf16.msra.mxu0 %v570
    %785 = vmatprep.subr.bf16.mxu0 0
    %786 = vmatpush2.bf16.msra.mxu0 %v569
    %787 = vmatprep.subr.bf16.mxu0 0
    %788 = vmatpush2.bf16.msra.mxu0 %v568
    %789 = vmatprep.subr.bf16.mxu0 0
    %790 = vmatpush2.bf16.msra.mxu0 %v567
    %791 = vmatprep.mubr.bf16.mxu0 %v246
    %792 = vmatmul.mubr.bf16.gmra.mxu0 %v244
    %v793 = vpop.f32.mrf.mxu0
    %v794 = vadd.f32 %v754, %v793
    %v795 = vpop.f32.mrf.mxu0
    %v796 = vpop.f32.mrf.mxu0
    %v797 = vpop.f32.mrf.mxu0
    %798 = vdwg.mxu0
    %v799 = vmax.f32 %v794, 0.0
    %v800 = vpack.c.bf16 %v799, %v799
    %v801 = vld [vmem:[#allocation7] sm:$0xf]
    %v802 = vld [vmem:[#allocation7 + $0x4] sm:$0xf]
    %v803 = vld [vmem:[#allocation7 + $0x8] sm:$0xf]
    %v804 = vld [vmem:[#allocation7 + $0xc] sm:$0xf]
    %v805 = vld [vmem:[#allocation7 + $0x10] sm:$0xf]
    %v806 = vld [vmem:[#allocation7 + $0x14] sm:$0xf]
    %v807 = vld [vmem:[#allocation7 + $0x18] sm:$0xf]
    %v808 = vld [vmem:[#allocation7 + $0x1c] sm:$0xf]
    %v809 = vld [vmem:[#allocation7 + $0x20] sm:$0xf]
    %v810 = vld [vmem:[#allocation7 + $0x24] sm:$0xf]
    %v811 = vld [vmem:[#allocation7 + $0x28] sm:$0xf]
    %v812 = vld [vmem:[#allocation7 + $0x2c] sm:$0xf]
    %v813 = vld [vmem:[#allocation7 + $0x30] sm:$0xf]
    %v814 = vld [vmem:[#allocation7 + $0x34] sm:$0xf]
    %v815 = vld [vmem:[#allocation7 + $0x38] sm:$0xf]
    %v816 = vld [vmem:[#allocation7 + $0x3c] sm:$0xf]
    %v817 = vld [vmem:[%s4] sm:$0x1]
    %v819 = vlaneseq
    %v820 = vshrl.u32 %v819, 7
    %v821 = vsub.s32 0, %v820
    %v822 = vrot.slane %v817, %v821
    %v840 = vunpack.c.l.b16 %v801
    %v841 = vunpack.c.l.b16 %v802
    %v842 = vunpack.c.l.b16 %v803
    %v843 = vunpack.c.l.b16 %v804
    %v844 = vunpack.c.l.b16 %v805
    %v845 = vunpack.c.l.b16 %v806
    %v846 = vunpack.c.l.b16 %v807
    %v847 = vunpack.c.l.b16 %v808
    %v848 = vunpack.c.l.b16 %v809
    %v849 = vunpack.c.l.b16 %v810
    %v850 = vunpack.c.l.b16 %v811
    %v851 = vunpack.c.l.b16 %v812
    %v852 = vunpack.c.l.b16 %v813
    %v853 = vunpack.c.l.b16 %v814
    %v854 = vunpack.c.l.b16 %v815
    %v855 = vunpack.c.l.b16 %v816
    %v856 = vpack.c.b16 %v841, %v840
    %v857 = vpack.c.b16 %v843, %v842
    %v858 = vpack.c.b16 %v845, %v844
    %v859 = vpack.c.b16 %v847, %v846
    %v860 = vpack.c.b16 %v849, %v848
    %v861 = vpack.c.b16 %v851, %v850
    %v862 = vpack.c.b16 %v853, %v852
    %v863 = vpack.c.b16 %v855, %v854
    %872 = vmatprep.subr.bf16.mxu0 0
    %873 = vmatpush1.bf16.msra.mxu0 %v863
    %874 = vmatprep.subr.bf16.mxu0 0
    %875 = vmatpush1.bf16.msra.mxu0 %v862
    %876 = vmatprep.subr.bf16.mxu0 0
    %877 = vmatpush1.bf16.msra.mxu0 %v861
    %878 = vmatprep.subr.bf16.mxu0 0
    %879 = vmatpush1.bf16.msra.mxu0 %v860
    %880 = vmatprep.subr.bf16.mxu0 0
    %881 = vmatpush1.bf16.msra.mxu0 %v859
    %882 = vmatprep.subr.bf16.mxu0 0
    %883 = vmatpush1.bf16.msra.mxu0 %v858
    %884 = vmatprep.subr.bf16.mxu0 0
    %885 = vmatpush1.bf16.msra.mxu0 %v857
    %886 = vmatprep.subr.bf16.mxu0 0
    %887 = vmatpush1.bf16.msra.mxu0 %v856
    %888 = vmatprep.subr.bf16.mxu0 0
    %889 = vmatpush2.bf16.msra.mxu0 0
    %890 = vmatprep.subr.bf16.mxu0 0
    %891 = vmatpush2.bf16.msra.mxu0 0
    %892 = vmatprep.subr.bf16.mxu0 0
    %893 = vmatpush2.bf16.msra.mxu0 0
    %894 = vmatprep.subr.bf16.mxu0 0
    %895 = vmatpush2.bf16.msra.mxu0 0
    %896 = vmatprep.subr.bf16.mxu0 0
    %897 = vmatpush2.bf16.msra.mxu0 0
    %898 = vmatprep.subr.bf16.mxu0 0
    %899 = vmatpush2.bf16.msra.mxu0 0
    %900 = vmatprep.subr.bf16.mxu0 0
    %901 = vmatpush2.bf16.msra.mxu0 0
    %902 = vmatprep.subr.bf16.mxu0 0
    %903 = vmatpush2.bf16.msra.mxu0 0
    %904 = vmatprep.mubr.bf16.mxu0 0
    %905 = vmatmul.mubr.bf16.gmra.mxu0 %v800
    %v906 = vpop.f32.mrf.mxu0
    %v907 = vadd.f32 %v822, %v906
    %v908 = vpop.f32.mrf.mxu0
    %v909 = vpop.f32.mrf.mxu0
    %v910 = vpop.f32.mrf.mxu0
    %911 = vdwg.mxu0
    %v912 = vlaneseq
    %v913 = vand.u32 %v912, 127
    %v914 = vsub.s32 %v913, 8
    %vm915 = vcmp.ge.s32.totalorder %v914, 0
    %vm916 = vcmp.lt.s32.totalorder %v914, 64
    %vm917 = vmand %vm915, %vm916
    %vm918 = vcmp.lt.s32.totalorder %v914, 0
    %v919 = vsub.s32 0, %v914
    %v920 = vsel %vm918, %v919, %v914
    %v921 = vmul.u32.u64.compose %v920, 3817748708
    %v922 = vextract.low.u32 %v921
    %v923 = vextract.high.u32 %v921
    %v924 = vshrl.u32 %v923, 3
    %v925 = vmul.u32 %v924, 9
    %v926 = vsub.s32 %v920, %v925
    %v927 = vsub.s32 0, %v926
    %v928 = vsel %vm918, %v927, %v926
    %vm929 = vcmp.ne.s32.totalorder %v928, 0
    %vm930 = vcmp.lt.s32.totalorder %v928, 0
    %vm931 = vmand %vm930, %vm929
    %v932 = vadd.s32 %v928, 9
    %v933 = vsel %vm931, %v932, %v928
    %vm934 = vcmp.eq.s32.totalorder %v933, 0
    %vm935 = vmand %vm917, %vm934
    %v936 = vmul.f32 %v907, 1.442695
    %v937 = vpow.pop %v936
    %v938 = vsel %vm935, %v937, %v907
    %939 = vst [vmem:[#allocation8] sm:$0x3] %v938
    // Predicated region
    $region34: #{tpu_custom_call.1} parent=1 // pred_check
      _
    $region35: #{tpu_custom_call.1} parent=1 // pred_check_branch
      %941 = sbr.rel (0) target = $region37
    $region36: #{tpu_custom_call.1} parent=1 // pred_region
      %s943 = ssub.s32 32, 32
      %944 = vsyncadd [#allocation4], %s943
      %s946 = sshll.u32 [#allocation8], 4
      %s947 = int_to_ptr.vmem [resolvable:$true] %s946
      %949 = dma.vmem_to_hbm [thread:$0]  %s947, 32, %s5, [#allocation4]
    $region37: #{tpu_custom_call.1} parent=1 // pred_fallthru
      _
    // Predicated region
    $region38: #{tpu_custom_call.1} parent=1 // pred_check
      _
    $region39: #{tpu_custom_call.1} parent=1 // pred_check_branch
      %951 = sbr.rel (0) target = $region41
    $region40: #{tpu_custom_call.1} parent=1 // pred_region
      %952 = dma.done [#allocation4], 32
    $region41: #{tpu_custom_call.1} parent=1 // pred_fallthru
      _
    %953 = vsyncpa [#allocation3], 1
    %954 = vsyncpa [#allocation6], 1
    %955 = vsyncpa [#allocation4], 1

</llo_original>
